<compile_context>
chip_gen: v7x
topology: tpu7x:2x2x1
jax: 0.10.0
libtpu: 0.0.40
codegen_flags: <defaults>
</compile_context>

<pallas_src>
import functools

import jax
import jax.numpy as jnp
from jax import lax
from jax.experimental import pallas as pl
from jax.experimental.pallas import tpu as pltpu


def _psn_kernel(w1_ref, b1_ref, w2_ref, b2_ref, x_ref, o_ref):
    # w1_ref: [H, D]   b1_ref: [H, 1]   w2_ref: [H, 1]
    # b2_ref: (1,) SMEM scalar          x_ref: [TB, D]   o_ref: [1, TB]
    #
    # Layer 1 on the MXU: contract D of both operands -> [H, TB]
    # (batch lands on the lane axis; no in-kernel or wrapper relayout of x).
    h = lax.dot_general(
        w1_ref[...],
        x_ref[...],
        dimension_numbers=(((1,), (1,)), ((), ())),
        preferred_element_type=jnp.float32,
    )
    h = jnp.maximum(h + b1_ref[...], 0.0)               # bias + ReLU (VPU)
    # Layer 2 (H -> 1): VPU multiply by the w2 column + XLU sublane reduce.
    out = jnp.sum(h * w2_ref[...], axis=0, keepdims=True) + b2_ref[0]
    o_ref[...] = out.astype(o_ref.dtype)


def _round_up(v, m):
    return ((v + m - 1) // m) * m


def _psn_forward_impl(x, w1, b1, w2, b2, *, tb=16384):
    """x: [B, D]; w1: [H, D]; b1: [H]; w2: [1, H]; b2: [1] (PyTorch Linear layout).

    Returns [B, 1], identical to PSNModel.forward.
    """
    B, D = x.shape
    H = w1.shape[0]

    if B <= 128:
        # Tiny batch: one full-extent block (block dims == array dims is legal).
        tb_eff = B
    else:
        # >= 2 grid steps (keeps v7x's second TensorCore busy), /128 lane-dense
        # output blocks, capped so double-buffered x tiles stay inside the
        # 32 MiB scoped-VMEM default on all generations.
        tb_eff = min(tb, _round_up(pl.cdiv(B, 2), 128))

    grid = (pl.cdiv(B, tb_eff),)        # ragged edge handled by Pallas, no pad

    # Glue (fused under jit): column-shaped params, 1-D scalar bias.
    b1c = b1.reshape(H, 1)
    w2c = w2.reshape(H, 1)
    b2s = b2.reshape(1)                 # 1-D scalar -> SMEM

    cost = pl.CostEstimate(
        flops=2 * B * D * H + 2 * B * H,
        transcendentals=0,
        bytes_accessed=(B * D + B + H * D + 2 * H + 1) * 4,
    )

    out = pl.pallas_call(
        _psn_kernel,
        out_shape=jax.ShapeDtypeStruct((1, B), x.dtype),
        grid=grid,
        in_specs=[
            pl.BlockSpec((H, D), lambda i: (0, 0)),              # w1: resident
            pl.BlockSpec((H, 1), lambda i: (0, 0)),              # b1: resident
            pl.BlockSpec((H, 1), lambda i: (0, 0)),              # w2: resident
            pl.BlockSpec(memory_space=pltpu.MemorySpace.SMEM),   # b2: scalar
            pl.BlockSpec((tb_eff, D), lambda i: (i, 0)),         # x: streamed
        ],
        out_specs=pl.BlockSpec((1, tb_eff), lambda i: (0, i)),
        compiler_params=pltpu.CompilerParams(
            dimension_semantics=("parallel",),
        ),
        cost_estimate=cost,
    )(w1, b1c, w2c, b2s, x)

    return out.reshape(B, 1)


# Single dispatch for transpose-free glue + pallas_call + reshape.
psn_forward = jax.jit(_psn_forward_impl, static_argnames=("tb",))


def psn_reference(x, w1, b1, w2, b2):
    h = jnp.maximum(x @ w1.T + b1, 0.0)
    return h @ w2.T + b2


if __name__ == "__main__":
    key = jax.random.PRNGKey(0)
    k_x, k_w1, k_w2, k_big = jax.random.split(key, 4)

    B = 8             # batch
    input_size = 16   # D
    hidden_nodes = 6  # H  (PSNModel default)

    x = jax.random.normal(k_x, (B, input_size), dtype=jnp.float32)

    # Deterministic init mirroring PSNModel.init_weights():
    #   weights ~ N(0, 1), biases = 0
    w1 = jax.random.normal(k_w1, (hidden_nodes, input_size), dtype=jnp.float32)
    b1 = jnp.zeros((hidden_nodes,), dtype=jnp.float32)
    w2 = jax.random.normal(k_w2, (1, hidden_nodes), dtype=jnp.float32)
    b2 = jnp.zeros((1,), dtype=jnp.float32)

    # Small-shape run (single full-extent block).
    out = jax.block_until_ready(psn_forward(x, w1, b1, w2, b2))
    ref = psn_reference(x, w1, b1, w2, b2)
    assert out.shape == (B, 1), out.shape
    assert jnp.allclose(out, ref, atol=1e-5, rtol=1e-5), (out, ref)

    # Gridded run: several batch tiles, resident weights, ragged edge block.
    B_big = 4096 + 200   # deliberately not a multiple of the tile
    x_big = jax.random.normal(k_big, (B_big, input_size), dtype=jnp.float32)
    out_big = jax.block_until_ready(psn_forward(x_big, w1, b1, w2, b2, tb=1024))
    ref_big = psn_reference(x_big, w1, b1, w2, b2)
    assert out_big.shape == (B_big, 1), out_big.shape
    assert jnp.allclose(out_big, ref_big, atol=1e-4, rtol=1e-4)

    print("KERNEL_OK")
</pallas_src>

<mosaic_0001>
module attributes {stable_mosaic.version = 11 : i64} {
  func.func @_psn_kernel(%arg0: i32, %arg1: memref<6x16xf32, #tpu.memory_space<vmem>>, %arg2: memref<6x1xf32, #tpu.memory_space<vmem>>, %arg3: memref<6x1xf32, #tpu.memory_space<vmem>>, %arg4: memref<1xf32, #tpu.memory_space<smem>>, %arg5: memref<8x16xf32, #tpu.memory_space<vmem>>, %arg6: memref<1x8xf32, #tpu.memory_space<vmem>>) attributes {dimension_semantics = [#tpu.dimension_semantics<parallel>], iteration_bounds = array<i64: 1>, scalar_prefetch = 0 : i64, scratch_operands = 0 : i64, tpu.core_type = #tpu.core_type<tc>, window_params = [{pipeline_mode = #tpu.pipeline_mode<synchronous>, transform_indices = @transform_0, window_bounds = array<i64: 6, 16>}, {pipeline_mode = #tpu.pipeline_mode<synchronous>, transform_indices = @transform_1, window_bounds = array<i64: 6, 1>}, {pipeline_mode = #tpu.pipeline_mode<synchronous>, transform_indices = @transform_2, window_bounds = array<i64: 6, 1>}, {transform_indices = @transform_3, window_bounds = array<i64: 1>}, {transform_indices = @transform_4, window_bounds = array<i64: 8, 16>}, {transform_indices = @transform_5, window_bounds = array<i64: 1, 8>}]} {
    %c0 = arith.constant 0 : index
    %c0_0 = arith.constant 0 : index
    %0 = vector.load %arg1[%c0, %c0_0] : memref<6x16xf32, #tpu.memory_space<vmem>>, vector<6x16xf32>
    %c0_1 = arith.constant 0 : index
    %c0_2 = arith.constant 0 : index
    %1 = vector.load %arg5[%c0_1, %c0_2] : memref<8x16xf32, #tpu.memory_space<vmem>>, vector<8x16xf32>
    %cst = arith.constant dense<0.000000e+00> : vector<6x8xf32>
    %2 = tpu.matmul %0, %1, %cst {dimension_numbers = #tpu.dot_dimension_numbers<[1], [1], [0], [0], [0, 0, 1, 0], [], []>} : vector<6x16xf32>, vector<8x16xf32>, vector<6x8xf32> -> vector<6x8xf32>
    %c0_3 = arith.constant 0 : index
    %c0_4 = arith.constant 0 : index
    %3 = vector.load %arg2[%c0_3, %c0_4] : memref<6x1xf32, #tpu.memory_space<vmem>>, vector<6x1xf32>
    %4 = vector.broadcast %3 : vector<6x1xf32> to vector<6x8xf32>
    %5 = arith.addf %2, %4 : vector<6x8xf32>
    %cst_5 = arith.constant 0.000000e+00 : f32
    %6 = vector.broadcast %cst_5 : f32 to vector<6x8xf32>
    %7 = arith.maximumf %5, %6 : vector<6x8xf32>
    %c0_6 = arith.constant 0 : index
    %c0_7 = arith.constant 0 : index
    %8 = vector.load %arg3[%c0_6, %c0_7] : memref<6x1xf32, #tpu.memory_space<vmem>>, vector<6x1xf32>
    %9 = vector.broadcast %8 : vector<6x1xf32> to vector<6x8xf32>
    %10 = arith.mulf %7, %9 : vector<6x8xf32>
    %cst_8 = arith.constant dense<0.000000e+00> : vector<8xf32>
    %11 = vector.multi_reduction <add>, %10, %cst_8 [0] : vector<6x8xf32> to vector<8xf32>
    %12 = vector.shape_cast %11 : vector<8xf32> to vector<1x8xf32>
    %c0_9 = arith.constant 0 : index
    %13 = memref.load %arg4[%c0_9] : memref<1xf32, #tpu.memory_space<smem>>
    %14 = vector.broadcast %13 : f32 to vector<1x8xf32>
    %15 = arith.addf %12, %14 : vector<1x8xf32>
    %c0_10 = arith.constant 0 : index
    %c0_11 = arith.constant 0 : index
    %16 = vector.load %arg6[%c0_10, %c0_11] : memref<1x8xf32, #tpu.memory_space<vmem>>, vector<1x8xf32>
    tpu.vector_store %arg6[%c0_10, %c0_11], %15 {strides = array<i32>} : memref<1x8xf32, #tpu.memory_space<vmem>>, vector<1x8xf32>,
    return
  }
  func.func @transform_0(%arg0: i32) -> (i32, i32) {
    %c0_i32 = arith.constant 0 : i32
    %c0_i32_0 = arith.constant 0 : i32
    %c0_i32_1 = arith.constant 0 : i32
    return %c0_i32, %c0_i32_0 : i32, i32
  }
  func.func @transform_1(%arg0: i32) -> (i32, i32) {
    %c0_i32 = arith.constant 0 : i32
    %c0_i32_0 = arith.constant 0 : i32
    %c0_i32_1 = arith.constant 0 : i32
    return %c0_i32, %c0_i32_0 : i32, i32
  }
  func.func @transform_2(%arg0: i32) -> (i32, i32) {
    %c0_i32 = arith.constant 0 : i32
    %c0_i32_0 = arith.constant 0 : i32
    %c0_i32_1 = arith.constant 0 : i32
    return %c0_i32, %c0_i32_0 : i32, i32
  }
  func.func @transform_3(%arg0: i32) -> i32 {
    %c0_i32 = arith.constant 0 : i32
    %c0_i32_0 = arith.constant 0 : i32
    return %c0_i32 : i32
  }
  func.func @transform_4(%arg0: i32) -> (i32, i32) {
    %c0_i32 = arith.constant 0 : i32
    %c0_i32_0 = arith.constant 0 : i32
    return %arg0, %c0_i32 : i32, i32
  }
  func.func @transform_5(%arg0: i32) -> (i32, i32) {
    %c0_i32 = arith.constant 0 : i32
    %c0_i32_0 = arith.constant 0 : i32
    return %c0_i32, %arg0 : i32, i32
  }
}

</mosaic_0001>

<llo_original>
// kernel: _psn_forward_impl.1
$region0: #{_psn_forward_impl.1}
  #allocation0 [shape = 'u32[]', space=smem, size = 0x4, offset = 0x4, fixed_abs, tag = 'smem constant byte address 0x4 - core index']
  #allocation1 [shape = 'u32[144,128]{1,0:T(1,128)}', space=vmem, size = 0x12000, scoped, tag = 'internal scratch']
  #allocation2 [shape = 'f32[1]{0:T(128)S(6)}', space=smem, size = 0x200, scoped, tag = 'scoped memory for _psn_forward_impl.1']
  %s0 = inlined_call_operand.vmem [shape: f32[6,16], index: 0, kind: input, shape index: {}]
  %s1 = inlined_call_operand.vmem [shape: f32[6,1], index: 1, kind: input, shape index: {}]
  %s2 = inlined_call_operand.vmem [shape: f32[6,1], index: 2, kind: input, shape index: {}]
  %s3 = inlined_call_operand.<no memory space> [shape: f32[1], index: 3, kind: input, shape index: {}]
  %s4 = inlined_call_operand.vmem [shape: f32[8,16], index: 4, kind: input, shape index: {}]
  %s5 = inlined_call_operand.hbm [shape: f32[1,8], index: 5, kind: output, shape index: {}]
  %s6 = sld [smem:[#allocation0]]
  $region30: #{_psn_forward_impl.1} parent=0
    _
  %s8 = ssub.s32 1, %s6
  %s9 = scalar_select 0, %s8, %s6
  %10 = sst [smem:[#allocation2]] %s3
  $region1: #{_psn_forward_impl.1} parent=0
    #allocation3 [shape = 'u8[512]{0}', space=vmem, size = 0x400, scoped, tag = 'output window, operand 0, single buffered']
    #allocation4 [shape = 's32[1]{0}', space=sflag, size = 0x4, scoped, tag = 'scoped memory for _psn_forward_impl.1']
    %11 = vsyncpa [#allocation4], 0
    // Predicated region
    $region2: #{_psn_forward_impl.1} parent=1 // pred_check
      _
    $region3: #{_psn_forward_impl.1} parent=1 // pred_check_branch
      %13 = sbr.rel (0) target = $region5
    $region4: #{_psn_forward_impl.1} parent=1 // pred_region
      _
    $region5: #{_psn_forward_impl.1} parent=1 // pred_fallthru
      _
    // Predicated region
    $region6: #{_psn_forward_impl.1} parent=1 // pred_check
      _
    $region7: #{_psn_forward_impl.1} parent=1 // pred_check_branch
      %15 = sbr.rel (0) target = $region9
    $region8: #{_psn_forward_impl.1} parent=1 // pred_region
      _
    $region9: #{_psn_forward_impl.1} parent=1 // pred_fallthru
      _
    // Predicated region
    $region10: #{_psn_forward_impl.1} parent=1 // pred_check
      _
    $region11: #{_psn_forward_impl.1} parent=1 // pred_check_branch
      %17 = sbr.rel (0) target = $region13
    $region12: #{_psn_forward_impl.1} parent=1 // pred_region
      _
    $region13: #{_psn_forward_impl.1} parent=1 // pred_fallthru
      _
    // Predicated region
    $region14: #{_psn_forward_impl.1} parent=1 // pred_check
      _
    $region15: #{_psn_forward_impl.1} parent=1 // pred_check_branch
      %19 = sbr.rel (0) target = $region17
    $region16: #{_psn_forward_impl.1} parent=1 // pred_region
      _
    $region17: #{_psn_forward_impl.1} parent=1 // pred_fallthru
      _
    // Predicated region
    $region18: #{_psn_forward_impl.1} parent=1 // pred_check
      _
    $region19: #{_psn_forward_impl.1} parent=1 // pred_check_branch
      %21 = sbr.rel (0) target = $region21
    $region20: #{_psn_forward_impl.1} parent=1 // pred_region
      _
    $region21: #{_psn_forward_impl.1} parent=1 // pred_fallthru
      _
    %v22 = vld [vmem:[%s0] sm:$0x3f]
    %v23 = vld [vmem:[%s4] sm:$0xff]
    %v24 = vld [vmem:[%s1] sm:$0x3f]
    %26 = vset.pattern.permute.xlu0 0
    %27 = vperm.xlu0 %26, %v24
    %v28 = vpop.permute.xlu0 %27
    %vm30 = vcmask 130048
    %v32 = vsel %vm30, %v22, 0
    %v35 = vsel %vm30, %v23, 0
    %37 = vmatprep.subr.mxu0 0.0
    %38 = vmatpush1.xpose.msra.mxu0 %v35
    %39 = vmatprep.subr.mxu0 0.0
    %40 = vmatpush1.xpose.msra.mxu0 0.0
    %41 = vmatprep.subr.mxu0 0.0
    %42 = vmatpush1.xpose.msra.mxu0 0.0
    %43 = vmatprep.subr.mxu0 0.0
    %44 = vmatpush1.xpose.msra.mxu0 0.0
    %45 = vmatprep.subr.mxu0 0.0
    %46 = vmatpush1.xpose.msra.mxu0 0.0
    %47 = vmatprep.subr.mxu0 0.0
    %48 = vmatpush1.xpose.msra.mxu0 0.0
    %49 = vmatprep.subr.mxu0 0.0
    %50 = vmatpush1.xpose.msra.mxu0 0.0
    %51 = vmatprep.subr.mxu0 0.0
    %52 = vmatpush1.xpose.msra.mxu0 0.0
    %53 = vmatprep.subr.mxu0 0.0
    %54 = vmatpush1.xpose.msra.mxu0 0.0
    %55 = vmatprep.subr.mxu0 0.0
    %56 = vmatpush1.xpose.msra.mxu0 0.0
    %57 = vmatprep.subr.mxu0 0.0
    %58 = vmatpush1.xpose.msra.mxu0 0.0
    %59 = vmatprep.subr.mxu0 0.0
    %60 = vmatpush1.xpose.msra.mxu0 0.0
    %61 = vmatprep.subr.mxu0 0.0
    %62 = vmatpush1.xpose.msra.mxu0 0.0
    %63 = vmatprep.subr.mxu0 0.0
    %64 = vmatpush1.xpose.msra.mxu0 0.0
    %65 = vmatprep.subr.mxu0 0.0
    %66 = vmatpush1.xpose.msra.mxu0 0.0
    %67 = vmatprep.subr.mxu0 0.0
    %68 = vmatpush1.xpose.msra.mxu0 0.0
    %69 = vmatprep.subr.mxu0 0.0
    %70 = vmatpush1.xpose.msra.mxu0 0.0
    %71 = vmatprep.subr.mxu0 0.0
    %72 = vmatpush1.xpose.msra.mxu0 0.0
    %73 = vmatprep.subr.mxu0 0.0
    %74 = vmatpush1.xpose.msra.mxu0 0.0
    %75 = vmatprep.subr.mxu0 0.0
    %76 = vmatpush1.xpose.msra.mxu0 0.0
    %77 = vmatprep.subr.mxu0 0.0
    %78 = vmatpush1.xpose.msra.mxu0 0.0
    %79 = vmatprep.subr.mxu0 0.0
    %80 = vmatpush1.xpose.msra.mxu0 0.0
    %81 = vmatprep.subr.mxu0 0.0
    %82 = vmatpush1.xpose.msra.mxu0 0.0
    %83 = vmatprep.subr.mxu0 0.0
    %84 = vmatpush1.xpose.msra.mxu0 0.0
    %85 = vmatprep.subr.mxu0 0.0
    %86 = vmatpush1.xpose.msra.mxu0 0.0
    %87 = vmatprep.subr.mxu0 0.0
    %88 = vmatpush1.xpose.msra.mxu0 0.0
    %89 = vmatprep.subr.mxu0 0.0
    %90 = vmatpush1.xpose.msra.mxu0 0.0
    %91 = vmatprep.subr.mxu0 0.0
    %92 = vmatpush1.xpose.msra.mxu0 0.0
    %93 = vmatprep.subr.mxu0 0.0
    %94 = vmatpush1.xpose.msra.mxu0 0.0
    %95 = vmatprep.subr.mxu0 0.0
    %96 = vmatpush1.xpose.msra.mxu0 0.0
    %97 = vmatprep.subr.mxu0 0.0
    %98 = vmatpush1.xpose.msra.mxu0 0.0
    %99 = vmatprep.subr.mxu0 0.0
    %100 = vmatpush1.xpose.msra.mxu0 0.0
    %101 = vmatprep.mubr.f32.mxu0 0.0
    %102 = vmatmul.mubr.f32.gmra.mrb[0].mxu0 %v32
    %v103 = vpop.f32.mrb[0].mxu0
    %v104 = vadd.f32 %v28, %v103
    %v105 = vpop.f32.mrb[0].mxu0
    %106 = vdwg.mxu0
    %v107 = vmax.f32 %v104, 0.0
    %v108 = vld [vmem:[%s2] sm:$0x3f]
    %110 = vset.pattern.permute.xlu0 0
    %111 = vperm.xlu0 %110, %v108
    %v112 = vpop.permute.xlu0 %111
    %v114 = vmul.f32 %v107, %v112
    %vm115 = vcmask 62464
    %v116 = vsel %vm115, %v114, 0.0
    %v117 = vrot.slane %v116, 4
    %v118 = vadd.f32 %v116, %v117
    %v119 = vrot.slane %v118, 2
    %v120 = vadd.f32 %v118, %v119
    %v121 = vrot.slane %v120, 1
    %v122 = vadd.f32 %v120, %v121
    %s123 = sld [smem:[#allocation2]]
    %v124 = vstv %s123
    %v125 = vadd.f32 %v122, %v124
    %vm126 = vcmask 57344
    %127 = vst.msk [vmem:[#allocation3] sm:$0x1] %vm126, %v125
    // Predicated region
    $region22: #{_psn_forward_impl.1} parent=1 // pred_check
      _
    $region23: #{_psn_forward_impl.1} parent=1 // pred_check_branch
      %129 = sbr.rel (0) target = $region25
    $region24: #{_psn_forward_impl.1} parent=1 // pred_region
      %s131 = ssub.s32 16, 16
      %132 = vsyncadd [#allocation4], %s131
      %s134 = sshll.u32 [#allocation3], 4
      %s135 = int_to_ptr.vmem [resolvable:$true] %s134
      %137 = dma.vmem_to_hbm [thread:$0]  %s135, 16, %s5, [#allocation4]
    $region25: #{_psn_forward_impl.1} parent=1 // pred_fallthru
      _
    // Predicated region
    $region26: #{_psn_forward_impl.1} parent=1 // pred_check
      _
    $region27: #{_psn_forward_impl.1} parent=1 // pred_check_branch
      %139 = sbr.rel (0) target = $region29
    $region28: #{_psn_forward_impl.1} parent=1 // pred_region
      %140 = dma.done [#allocation4], 16
    $region29: #{_psn_forward_impl.1} parent=1 // pred_fallthru
      _
    %141 = vsyncpa [#allocation4], 1

</llo_original>
